<compile_context>
chip_gen: v5e
topology: v5e:2x2
jax: 0.10.0
libtpu: 0.0.40
codegen_flags: <defaults>
</compile_context>

<pallas_src>
import jax
import jax.numpy as jnp
from jax.experimental import pallas as pl
from jax.experimental.pallas import tpu as pltpu

NEG_SLOPE = 0.01   # nn.LeakyReLU default
OUT_PAD = 128      # lane-dense padded output width (true out_dim sliced in wrapper)


def _leaky(y):
    return jnp.where(y >= 0, y, NEG_SLOPE * y)


# ----------------------------- Fused Pallas kernel -------------------------- #

def fused_rgcn_kernel(z0_ref, adjs_ref, in_w_ref, in_b_ref,
                      w1_ref, r1_ref, b1_ref,
                      w2_ref, r2_ref, b2_ref,
                      ow_ref, ob_ref, o_ref):
    """Entire RGCN forward for both branches stacked along rows.

    z0_ref   : [2N, E]        rows 0..N-1 = mask_feature, rows N..2N-1 = feature-mask_feature
    adjs_ref : [R*2N, 2N]     per-relation block-diag(A_r, A_r), stacked along rows
    in_w/in_b: [E, H], [1, H] linear_relu_input (pre-transposed)
    w{1,2}   : [R, H, H]      per-relation RGCN weights (pre-transposed)
    r{1,2}   : [H, H]         RGCN root weights (pre-transposed)
    b{1,2}   : [1, H]         RGCN biases
    ow/ob    : [H, OUT_PAD]   linear_output zero-padded to lane-dense width
    o_ref    : [N, OUT_PAD]   elementwise product of the two branches (padded)
    """
    M = z0_ref.shape[0]          # 2N (stacked branches)
    N = M // 2
    R = adjs_ref.shape[0] // M   # relation count (static)

    adjs = adjs_ref[...]         # resident in VMEM, reused by both RGCN layers

    # linear_relu_input (shared weights, both branches in one matmul)
    z = jnp.dot(z0_ref[...], in_w_ref[...], preferred_element_type=jnp.float32)
    z = _leaky(z + in_b_ref[...])

    def rgcn_layer(z, w_ref, root_ref, b_ref):
        # root transform: [2N, H] @ [H, H]
        acc = jnp.dot(z, root_ref[...], preferred_element_type=jnp.float32)
        # single stacked aggregation for all relations and both branches:
        # [R*2N, 2N] @ [2N, H] -> [R*2N, H]
        agg = jnp.dot(adjs, z, preferred_element_type=jnp.float32)
        for r in range(R):       # static, small relation count
            acc = acc + jnp.dot(agg[r * M:(r + 1) * M, :], w_ref[r],
                                preferred_element_type=jnp.float32)
        # bias added once, after the accumulation loop
        return acc + b_ref[...]

    z = rgcn_layer(z, w1_ref, r1_ref, b1_ref)
    # TODO(synk): F.dropout(p=0.3) between rgcn1 and rgcn2 is stochastic only in
    # training mode; inference (identity) semantics are used here.
    z = rgcn_layer(z, w2_ref, r2_ref, b2_ref)

    # final linear_output for BOTH branches in one lane-dense matmul, then the
    # elementwise product of the two branches (the value RGCN.forward returns).
    y = jnp.dot(z, ow_ref[...], preferred_element_type=jnp.float32) + ob_ref[...]
    o_ref[...] = y[:N, :] * y[N:, :]


# ------------------------------ Wrapper -------------------------------------- #

_VMEM = pl.BlockSpec(memory_space=pltpu.MemorySpace.VMEM)


def build_stacked_adjacency(edge_index, edge_type, num_nodes, num_relations):
    """Per-relation mean-normalized dense adjacency A[r, dst, src] = 1/deg_r(dst),
    block-diag duplicated for the 2 stacked branches, stacked along rows.
    Returns [R * 2N, 2N]."""
    src = edge_index[0]
    dst = edge_index[1]
    a = jnp.zeros((num_relations, num_nodes, num_nodes), jnp.float32)
    a = a.at[edge_type, dst, src].add(1.0)
    deg = a.sum(axis=-1, keepdims=True)          # incoming edge count per (r, dst)
    a = a / jnp.maximum(deg, 1.0)                # mean aggregation; 0-deg rows stay 0
    z = jnp.zeros_like(a)
    top = jnp.concatenate([a, z], axis=2)        # [R, N, 2N]
    bot = jnp.concatenate([z, a], axis=2)        # [R, N, 2N]
    a2 = jnp.concatenate([top, bot], axis=1)     # [R, 2N, 2N] block-diag per relation
    return a2.reshape(num_relations * 2 * num_nodes, 2 * num_nodes)


def init_params(key, emb_dim, hid_dim, out_dim, num_rel):
    ks = jax.random.split(key, 10)
    scale = 0.1
    p = {
        # linear_relu_input : Linear(emb_dim, hid_dim) stored as [in, out]
        "in_w": scale * jax.random.normal(ks[0], (emb_dim, hid_dim), jnp.float32),
        "in_b": scale * jax.random.normal(ks[1], (1, hid_dim), jnp.float32),
        # rgcn1 : per-relation weight [R, hid, hid], root [hid, hid], bias [1, hid]
        "rgcn1_w": scale * jax.random.normal(ks[2], (num_rel, hid_dim, hid_dim), jnp.float32),
        "rgcn1_root": scale * jax.random.normal(ks[3], (hid_dim, hid_dim), jnp.float32),
        "rgcn1_b": scale * jax.random.normal(ks[4], (1, hid_dim), jnp.float32),
        # rgcn2
        "rgcn2_w": scale * jax.random.normal(ks[5], (num_rel, hid_dim, hid_dim), jnp.float32),
        "rgcn2_root": scale * jax.random.normal(ks[6], (hid_dim, hid_dim), jnp.float32),
        "rgcn2_b": scale * jax.random.normal(ks[7], (1, hid_dim), jnp.float32),
        # linear_output : Linear(hid_dim, out_dim)
        "out_w": scale * jax.random.normal(ks[8], (hid_dim, out_dim), jnp.float32),
        "out_b": scale * jax.random.normal(ks[9], (1, out_dim), jnp.float32),
    }
    # NOTE: linear_relu_input2, linear_relu_output1, linear_output22 are defined
    # in the PyTorch module but never used in forward(); omitted here.
    return p


def rgcn_forward(p, mask_feature, feature, edge_index, edge_type):
    num_nodes = mask_feature.shape[0]
    num_rel = p["rgcn1_w"].shape[0]
    hid_dim = p["rgcn1_root"].shape[0]
    out_dim = p["out_w"].shape[1]

    mask_feature = mask_feature.astype(jnp.float32)
    feature = feature.astype(jnp.float32)

    # Stack both branches along rows: rows [0:N) = x branch, rows [N:2N) = m branch.
    z0 = jnp.concatenate([mask_feature, feature - mask_feature], axis=0)

    # Stacked block-diagonal relation adjacency (built once, read once).
    adjs = build_stacked_adjacency(edge_index, edge_type, num_nodes, num_rel)

    # Zero-pad the final linear to a lane-dense output width.
    out_w_p = jnp.zeros((hid_dim, OUT_PAD), jnp.float32).at[:, :out_dim].set(p["out_w"])
    out_b_p = jnp.zeros((1, OUT_PAD), jnp.float32).at[:, :out_dim].set(p["out_b"])

    out_padded = pl.pallas_call(
        fused_rgcn_kernel,
        out_shape=jax.ShapeDtypeStruct((num_nodes, OUT_PAD), jnp.float32),
        in_specs=[_VMEM] * 12,
        out_specs=_VMEM,
        compiler_params=pltpu.CompilerParams(vmem_limit_bytes=32 * 1024 * 1024),
    )(z0, adjs,
      p["in_w"], p["in_b"],
      p["rgcn1_w"], p["rgcn1_root"], p["rgcn1_b"],
      p["rgcn2_w"], p["rgcn2_root"], p["rgcn2_b"],
      out_w_p, out_b_p)

    # The `aplha` tensor in the PyTorch forward is computed but unused -> omitted.
    return out_padded[:, :out_dim]


if __name__ == "__main__":
    N_NODES = 8
    N_EDGES = 16
    EMB_DIM = 16
    HID_DIM = 128
    OUT_DIM = 3
    NUM_REL = 2

    key = jax.random.PRNGKey(0)
    k_mf, k_f, k_ei, k_et, k_p = jax.random.split(key, 5)

    mask_feature = jax.random.normal(k_mf, (N_NODES, EMB_DIM), jnp.float32)
    feature = jax.random.normal(k_f, (N_NODES, EMB_DIM), jnp.float32)
    edge_index = jax.random.randint(k_ei, (2, N_EDGES), 0, N_NODES)
    edge_type = jax.random.randint(k_et, (N_EDGES,), 0, NUM_REL)

    params = init_params(k_p, EMB_DIM, HID_DIM, OUT_DIM, NUM_REL)

    out = rgcn_forward(params, mask_feature, feature, edge_index, edge_type)
    out = jax.block_until_ready(out)
    assert out.shape == (N_NODES, OUT_DIM) and out.dtype == jnp.float32

    # Pure-JAX reference check of the fused kernel's math.
    def _leaky_ref(y):
        return jnp.where(y >= 0, y, NEG_SLOPE * y)

    def _ref_branch(feat, p, adj):
        x = _leaky_ref(feat @ p["in_w"] + p["in_b"])
        for w, r, b in ((p["rgcn1_w"], p["rgcn1_root"], p["rgcn1_b"]),
                        (p["rgcn2_w"], p["rgcn2_root"], p["rgcn2_b"])):
            acc = x @ r + b
            for rel in range(NUM_REL):
                acc = acc + (adj[rel] @ x) @ w[rel]
            x = acc
        return x @ p["out_w"] + p["out_b"]

    src, dst = edge_index[0], edge_index[1]
    a_ref = jnp.zeros((NUM_REL, N_NODES, N_NODES), jnp.float32).at[edge_type, dst, src].add(1.0)
    a_ref = a_ref / jnp.maximum(a_ref.sum(-1, keepdims=True), 1.0)
    ref = _ref_branch(mask_feature, params, a_ref) * _ref_branch(feature - mask_feature, params, a_ref)
    assert jnp.allclose(out, ref, rtol=1e-5, atol=1e-5)

    print("KERNEL_OK")
</pallas_src>

<mosaic_0001>
module attributes {stable_mosaic.version = 11 : i64} {
  func.func @fused_rgcn_kernel(%arg0: memref<16x16xf32, #tpu.memory_space<vmem>>, %arg1: memref<32x16xf32, #tpu.memory_space<vmem>>, %arg2: memref<16x128xf32, #tpu.memory_space<vmem>>, %arg3: memref<1x128xf32, #tpu.memory_space<vmem>>, %arg4: memref<2x128x128xf32, #tpu.memory_space<vmem>>, %arg5: memref<128x128xf32, #tpu.memory_space<vmem>>, %arg6: memref<1x128xf32, #tpu.memory_space<vmem>>, %arg7: memref<2x128x128xf32, #tpu.memory_space<vmem>>, %arg8: memref<128x128xf32, #tpu.memory_space<vmem>>, %arg9: memref<1x128xf32, #tpu.memory_space<vmem>>, %arg10: memref<128x128xf32, #tpu.memory_space<vmem>>, %arg11: memref<1x128xf32, #tpu.memory_space<vmem>>, %arg12: memref<8x128xf32, #tpu.memory_space<vmem>>) attributes {dimension_semantics = [], scalar_prefetch = 0 : i64, scratch_operands = 0 : i64, tpu.core_type = #tpu.core_type<tc>} {
    %c0 = arith.constant 0 : index
    %c0_0 = arith.constant 0 : index
    %0 = vector.load %arg1[%c0, %c0_0] : memref<32x16xf32, #tpu.memory_space<vmem>>, vector<32x16xf32>
    %c0_1 = arith.constant 0 : index
    %c0_2 = arith.constant 0 : index
    %1 = vector.load %arg0[%c0_1, %c0_2] : memref<16x16xf32, #tpu.memory_space<vmem>>, vector<16x16xf32>
    %c0_3 = arith.constant 0 : index
    %c0_4 = arith.constant 0 : index
    %2 = vector.load %arg2[%c0_3, %c0_4] : memref<16x128xf32, #tpu.memory_space<vmem>>, vector<16x128xf32>
    %cst = arith.constant dense<0.000000e+00> : vector<16x128xf32>
    %3 = tpu.matmul %1, %2, %cst {dimension_numbers = #tpu.dot_dimension_numbers<[1], [0], [0], [1], [0, 0, 1, 1], [], []>} : vector<16x16xf32>, vector<16x128xf32>, vector<16x128xf32> -> vector<16x128xf32>
    %c0_5 = arith.constant 0 : index
    %c0_6 = arith.constant 0 : index
    %4 = vector.load %arg3[%c0_5, %c0_6] : memref<1x128xf32, #tpu.memory_space<vmem>>, vector<1x128xf32>
    %5 = vector.broadcast %4 : vector<1x128xf32> to vector<16x128xf32>
    %6 = arith.addf %3, %5 : vector<16x128xf32>
    %cst_7 = arith.constant 0.000000e+00 : f32
    %7 = vector.broadcast %cst_7 : f32 to vector<16x128xf32>
    %8 = arith.cmpf oge, %6, %7 : vector<16x128xf32>
    %cst_8 = arith.constant 0.00999999977 : f32
    %9 = vector.broadcast %cst_8 : f32 to vector<16x128xf32>
    %10 = arith.mulf %9, %6 : vector<16x128xf32>
    %11 = arith.select %8, %6, %10 : vector<16x128xi1>, vector<16x128xf32>
    %c0_9 = arith.constant 0 : index
    %c0_10 = arith.constant 0 : index
    %12 = vector.load %arg5[%c0_9, %c0_10] : memref<128x128xf32, #tpu.memory_space<vmem>>, vector<128x128xf32>
    %cst_11 = arith.constant dense<0.000000e+00> : vector<16x128xf32>
    %13 = tpu.matmul %11, %12, %cst_11 {dimension_numbers = #tpu.dot_dimension_numbers<[1], [0], [0], [1], [0, 0, 1, 1], [], []>} : vector<16x128xf32>, vector<128x128xf32>, vector<16x128xf32> -> vector<16x128xf32>
    %cst_12 = arith.constant dense<0.000000e+00> : vector<32x128xf32>
    %14 = tpu.matmul %0, %11, %cst_12 {dimension_numbers = #tpu.dot_dimension_numbers<[1], [0], [0], [1], [0, 0, 1, 1], [], []>} : vector<32x16xf32>, vector<16x128xf32>, vector<32x128xf32> -> vector<32x128xf32>
    %15 = vector.extract_strided_slice %14 {offsets = [0, 0], sizes = [16, 128], strides = [1, 1]} : vector<32x128xf32> to vector<16x128xf32>
    %c0_13 = arith.constant 0 : index
    %c0_14 = arith.constant 0 : index
    %c0_15 = arith.constant 0 : index
    %16 = vector.load %arg4[%c0_13, %c0_14, %c0_15] : memref<2x128x128xf32, #tpu.memory_space<vmem>>, vector<1x128x128xf32>
    %17 = vector.shape_cast %16 : vector<1x128x128xf32> to vector<128x128xf32>
    %cst_16 = arith.constant dense<0.000000e+00> : vector<16x128xf32>
    %18 = tpu.matmul %15, %17, %cst_16 {dimension_numbers = #tpu.dot_dimension_numbers<[1], [0], [0], [1], [0, 0, 1, 1], [], []>} : vector<16x128xf32>, vector<128x128xf32>, vector<16x128xf32> -> vector<16x128xf32>
    %19 = arith.addf %13, %18 : vector<16x128xf32>
    %20 = vector.extract_strided_slice %14 {offsets = [16, 0], sizes = [16, 128], strides = [1, 1]} : vector<32x128xf32> to vector<16x128xf32>
    %c1 = arith.constant 1 : index
    %c0_17 = arith.constant 0 : index
    %c0_18 = arith.constant 0 : index
    %21 = vector.load %arg4[%c1, %c0_17, %c0_18] : memref<2x128x128xf32, #tpu.memory_space<vmem>>, vector<1x128x128xf32>
    %22 = vector.shape_cast %21 : vector<1x128x128xf32> to vector<128x128xf32>
    %cst_19 = arith.constant dense<0.000000e+00> : vector<16x128xf32>
    %23 = tpu.matmul %20, %22, %cst_19 {dimension_numbers = #tpu.dot_dimension_numbers<[1], [0], [0], [1], [0, 0, 1, 1], [], []>} : vector<16x128xf32>, vector<128x128xf32>, vector<16x128xf32> -> vector<16x128xf32>
    %24 = arith.addf %19, %23 : vector<16x128xf32>
    %c0_20 = arith.constant 0 : index
    %c0_21 = arith.constant 0 : index
    %25 = vector.load %arg6[%c0_20, %c0_21] : memref<1x128xf32, #tpu.memory_space<vmem>>, vector<1x128xf32>
    %26 = vector.broadcast %25 : vector<1x128xf32> to vector<16x128xf32>
    %27 = arith.addf %24, %26 : vector<16x128xf32>
    %c0_22 = arith.constant 0 : index
    %c0_23 = arith.constant 0 : index
    %28 = vector.load %arg8[%c0_22, %c0_23] : memref<128x128xf32, #tpu.memory_space<vmem>>, vector<128x128xf32>
    %cst_24 = arith.constant dense<0.000000e+00> : vector<16x128xf32>
    %29 = tpu.matmul %27, %28, %cst_24 {dimension_numbers = #tpu.dot_dimension_numbers<[1], [0], [0], [1], [0, 0, 1, 1], [], []>} : vector<16x128xf32>, vector<128x128xf32>, vector<16x128xf32> -> vector<16x128xf32>
    %cst_25 = arith.constant dense<0.000000e+00> : vector<32x128xf32>
    %30 = tpu.matmul %0, %27, %cst_25 {dimension_numbers = #tpu.dot_dimension_numbers<[1], [0], [0], [1], [0, 0, 1, 1], [], []>} : vector<32x16xf32>, vector<16x128xf32>, vector<32x128xf32> -> vector<32x128xf32>
    %31 = vector.extract_strided_slice %30 {offsets = [0, 0], sizes = [16, 128], strides = [1, 1]} : vector<32x128xf32> to vector<16x128xf32>
    %c0_26 = arith.constant 0 : index
    %c0_27 = arith.constant 0 : index
    %c0_28 = arith.constant 0 : index
    %32 = vector.load %arg7[%c0_26, %c0_27, %c0_28] : memref<2x128x128xf32, #tpu.memory_space<vmem>>, vector<1x128x128xf32>
    %33 = vector.shape_cast %32 : vector<1x128x128xf32> to vector<128x128xf32>
    %cst_29 = arith.constant dense<0.000000e+00> : vector<16x128xf32>
    %34 = tpu.matmul %31, %33, %cst_29 {dimension_numbers = #tpu.dot_dimension_numbers<[1], [0], [0], [1], [0, 0, 1, 1], [], []>} : vector<16x128xf32>, vector<128x128xf32>, vector<16x128xf32> -> vector<16x128xf32>
    %35 = arith.addf %29, %34 : vector<16x128xf32>
    %36 = vector.extract_strided_slice %30 {offsets = [16, 0], sizes = [16, 128], strides = [1, 1]} : vector<32x128xf32> to vector<16x128xf32>
    %c1_30 = arith.constant 1 : index
    %c0_31 = arith.constant 0 : index
    %c0_32 = arith.constant 0 : index
    %37 = vector.load %arg7[%c1_30, %c0_31, %c0_32] : memref<2x128x128xf32, #tpu.memory_space<vmem>>, vector<1x128x128xf32>
    %38 = vector.shape_cast %37 : vector<1x128x128xf32> to vector<128x128xf32>
    %cst_33 = arith.constant dense<0.000000e+00> : vector<16x128xf32>
    %39 = tpu.matmul %36, %38, %cst_33 {dimension_numbers = #tpu.dot_dimension_numbers<[1], [0], [0], [1], [0, 0, 1, 1], [], []>} : vector<16x128xf32>, vector<128x128xf32>, vector<16x128xf32> -> vector<16x128xf32>
    %40 = arith.addf %35, %39 : vector<16x128xf32>
    %c0_34 = arith.constant 0 : index
    %c0_35 = arith.constant 0 : index
    %41 = vector.load %arg9[%c0_34, %c0_35] : memref<1x128xf32, #tpu.memory_space<vmem>>, vector<1x128xf32>
    %42 = vector.broadcast %41 : vector<1x128xf32> to vector<16x128xf32>
    %43 = arith.addf %40, %42 : vector<16x128xf32>
    %c0_36 = arith.constant 0 : index
    %c0_37 = arith.constant 0 : index
    %44 = vector.load %arg10[%c0_36, %c0_37] : memref<128x128xf32, #tpu.memory_space<vmem>>, vector<128x128xf32>
    %cst_38 = arith.constant dense<0.000000e+00> : vector<16x128xf32>
    %45 = tpu.matmul %43, %44, %cst_38 {dimension_numbers = #tpu.dot_dimension_numbers<[1], [0], [0], [1], [0, 0, 1, 1], [], []>} : vector<16x128xf32>, vector<128x128xf32>, vector<16x128xf32> -> vector<16x128xf32>
    %c0_39 = arith.constant 0 : index
    %c0_40 = arith.constant 0 : index
    %46 = vector.load %arg11[%c0_39, %c0_40] : memref<1x128xf32, #tpu.memory_space<vmem>>, vector<1x128xf32>
    %47 = vector.broadcast %46 : vector<1x128xf32> to vector<16x128xf32>
    %48 = arith.addf %45, %47 : vector<16x128xf32>
    %49 = vector.extract_strided_slice %48 {offsets = [0, 0], sizes = [8, 128], strides = [1, 1]} : vector<16x128xf32> to vector<8x128xf32>
    %50 = vector.extract_strided_slice %48 {offsets = [8, 0], sizes = [8, 128], strides = [1, 1]} : vector<16x128xf32> to vector<8x128xf32>
    %51 = arith.mulf %49, %50 : vector<8x128xf32>
    %c0_41 = arith.constant 0 : index
    %c0_42 = arith.constant 0 : index
    %52 = vector.load %arg12[%c0_41, %c0_42] : memref<8x128xf32, #tpu.memory_space<vmem>>, vector<8x128xf32>
    tpu.vector_store %arg12[%c0_41, %c0_42], %51 {strides = array<i32>} : memref<8x128xf32, #tpu.memory_space<vmem>>, vector<8x128xf32>,
    return
  }
}

</mosaic_0001>

<llo_original>
// kernel: tpu_custom_call.1
$region0: #{tpu_custom_call.1}
  #allocation0 [shape = 'u32[]', space=smem, size = 0x4, offset = 0x4, fixed_abs, tag = 'smem constant byte address 0x4 - core index']
  #allocation1 [shape = 'u32[72,128]{1,0:T(1,128)}', space=vmem, size = 0x9000, scoped, tag = 'internal scratch']
  %s0 = inlined_call_operand.vmem [shape: f32[16,16], index: 0, kind: input, shape index: {}]
  %s1 = inlined_call_operand.vmem [shape: f32[32,16], index: 1, kind: input, shape index: {}]
  %s2 = inlined_call_operand.vmem [shape: f32[16,128], index: 2, kind: input, shape index: {}]
  %s3 = inlined_call_operand.vmem [shape: f32[1,128], index: 3, kind: input, shape index: {}]
  %s4 = inlined_call_operand.hbm [shape: f32[2,128,128], index: 4, kind: input, shape index: {}]
  %s5 = inlined_call_operand.hbm [shape: f32[128,128], index: 5, kind: input, shape index: {}]
  %s6 = inlined_call_operand.vmem [shape: f32[1,128], index: 6, kind: input, shape index: {}]
  %s7 = inlined_call_operand.hbm [shape: f32[2,128,128], index: 7, kind: input, shape index: {}]
  %s8 = inlined_call_operand.hbm [shape: f32[128,128], index: 8, kind: input, shape index: {}]
  %s9 = inlined_call_operand.vmem [shape: f32[1,128], index: 9, kind: input, shape index: {}]
  %s10 = inlined_call_operand.hbm [shape: f32[128,128], index: 10, kind: input, shape index: {}]
  %s11 = inlined_call_operand.vmem [shape: f32[1,128], index: 11, kind: input, shape index: {}]
  %s12 = inlined_call_operand.hbm [shape: f32[8,128], index: 12, kind: output, shape index: {}]
  %s13 = sld [smem:[#allocation0]]
  $region78: #{tpu_custom_call.1} parent=0
    _
  %s15 = ssub.s32 1, %s13
  %s16 = scalar_select 0, %s15, %s13
  $region1: #{tpu_custom_call.1} parent=0
    #allocation2 [shape = 'u8[131072]{0}', space=vmem, size = 0x20000, scoped, tag = 'input window, operand 4, single buffered']
    #allocation3 [shape = 's32[1]{0}', space=sflag, size = 0x4, scoped, tag = 'scoped memory for tpu_custom_call.1']
    #allocation4 [shape = 's32[1]{0}', space=sflag, size = 0x4, scoped, tag = 'scoped memory for tpu_custom_call.1']
    #allocation5 [shape = 'u8[65536]{0}', space=vmem, size = 0x10000, scoped, tag = 'input window, operand 5, single buffered']
    #allocation6 [shape = 's32[1]{0}', space=sflag, size = 0x4, scoped, tag = 'scoped memory for tpu_custom_call.1']
    #allocation7 [shape = 'u8[131072]{0}', space=vmem, size = 0x20000, scoped, tag = 'input window, operand 7, single buffered']
    #allocation8 [shape = 'u8[65536]{0}', space=vmem, size = 0x10000, scoped, tag = 'input window, operand 8, single buffered']
    #allocation9 [shape = 's32[1]{0}', space=sflag, size = 0x4, scoped, tag = 'scoped memory for tpu_custom_call.1']
    #allocation10 [shape = 'u8[65536]{0}', space=vmem, size = 0x10000, scoped, tag = 'input window, operand 10, single buffered']
    #allocation11 [shape = 'u8[4096]{0}', space=vmem, size = 0x1000, scoped, tag = 'output window, operand 0, single buffered']
    %17 = vsyncpa [#allocation3], 0
    %18 = vsyncpa [#allocation6], 0
    %19 = vsyncpa [#allocation9], 0
    %20 = vsyncpa [#allocation4], 0
    // Predicated region
    $region2: #{tpu_custom_call.1} parent=1 // pred_check
      _
    $region3: #{tpu_custom_call.1} parent=1 // pred_check_branch
      %22 = sbr.rel (0) target = $region5
    $region4: #{tpu_custom_call.1} parent=1 // pred_region
      _
    $region5: #{tpu_custom_call.1} parent=1 // pred_fallthru
      _
    // Predicated region
    $region6: #{tpu_custom_call.1} parent=1 // pred_check
      _
    $region7: #{tpu_custom_call.1} parent=1 // pred_check_branch
      %24 = sbr.rel (0) target = $region9
    $region8: #{tpu_custom_call.1} parent=1 // pred_region
      _
    $region9: #{tpu_custom_call.1} parent=1 // pred_fallthru
      _
    // Predicated region
    $region10: #{tpu_custom_call.1} parent=1 // pred_check
      _
    $region11: #{tpu_custom_call.1} parent=1 // pred_check_branch
      %26 = sbr.rel (0) target = $region13
    $region12: #{tpu_custom_call.1} parent=1 // pred_region
      _
    $region13: #{tpu_custom_call.1} parent=1 // pred_fallthru
      _
    // Predicated region
    $region14: #{tpu_custom_call.1} parent=1 // pred_check
      _
    $region15: #{tpu_custom_call.1} parent=1 // pred_check_branch
      %28 = sbr.rel (0) target = $region17
    $region16: #{tpu_custom_call.1} parent=1 // pred_region
      _
    $region17: #{tpu_custom_call.1} parent=1 // pred_fallthru
      _
    // Predicated region
    $region18: #{tpu_custom_call.1} parent=1 // pred_check
      _
    $region19: #{tpu_custom_call.1} parent=1 // pred_check_branch
      %30 = sbr.rel (0) target = $region21
    $region20: #{tpu_custom_call.1} parent=1 // pred_region
      %32 = vsyncadd [#allocation3], 0
      %s33 = sshll.u32 %s4, 4
      %s34 = int_to_ptr.hbm [resolvable:$true] %s33
      %s35 = sshll.u32 [#allocation2], 4
      %s36 = int_to_ptr.vmem [resolvable:$true] %s35
      %41 = dma.hbm_to_vmem [thread:$0]  %s34, 4096, %s36, [#allocation3], 128, 128, 8
    $region21: #{tpu_custom_call.1} parent=1 // pred_fallthru
      _
    // Predicated region
    $region22: #{tpu_custom_call.1} parent=1 // pred_check
      _
    $region23: #{tpu_custom_call.1} parent=1 // pred_check_branch
      %43 = sbr.rel (0) target = $region25
    $region24: #{tpu_custom_call.1} parent=1 // pred_region
      %45 = vsyncadd [#allocation6], 0
      %s46 = sshll.u32 %s5, 4
      %s47 = int_to_ptr.hbm [resolvable:$true] %s46
      %s48 = sshll.u32 [#allocation5], 4
      %s49 = int_to_ptr.vmem [resolvable:$true] %s48
      %54 = dma.hbm_to_vmem [thread:$0]  %s47, 2048, %s49, [#allocation6], 128, 128, 8
    $region25: #{tpu_custom_call.1} parent=1 // pred_fallthru
      _
    // Predicated region
    $region26: #{tpu_custom_call.1} parent=1 // pred_check
      _
    $region27: #{tpu_custom_call.1} parent=1 // pred_check_branch
      %56 = sbr.rel (0) target = $region29
    $region28: #{tpu_custom_call.1} parent=1 // pred_region
      _
    $region29: #{tpu_custom_call.1} parent=1 // pred_fallthru
      _
    // Predicated region
    $region30: #{tpu_custom_call.1} parent=1 // pred_check
      _
    $region31: #{tpu_custom_call.1} parent=1 // pred_check_branch
      %58 = sbr.rel (0) target = $region33
    $region32: #{tpu_custom_call.1} parent=1 // pred_region
      %60 = vsyncadd [#allocation6], 0
      %s61 = sshll.u32 %s7, 4
      %s62 = int_to_ptr.hbm [resolvable:$true] %s61
      %s63 = sshll.u32 [#allocation7], 4
      %s64 = int_to_ptr.vmem [resolvable:$true] %s63
      %69 = dma.hbm_to_vmem [thread:$0]  %s62, 4096, %s64, [#allocation6], 128, 128, 8
    $region33: #{tpu_custom_call.1} parent=1 // pred_fallthru
      _
    // Predicated region
    $region34: #{tpu_custom_call.1} parent=1 // pred_check
      _
    $region35: #{tpu_custom_call.1} parent=1 // pred_check_branch
      %71 = sbr.rel (0) target = $region37
    $region36: #{tpu_custom_call.1} parent=1 // pred_region
      %73 = vsyncadd [#allocation9], 0
      %s74 = sshll.u32 %s8, 4
      %s75 = int_to_ptr.hbm [resolvable:$true] %s74
      %s76 = sshll.u32 [#allocation8], 4
      %s77 = int_to_ptr.vmem [resolvable:$true] %s76
      %82 = dma.hbm_to_vmem [thread:$0]  %s75, 2048, %s77, [#allocation9], 128, 128, 8
    $region37: #{tpu_custom_call.1} parent=1 // pred_fallthru
      _
    // Predicated region
    $region38: #{tpu_custom_call.1} parent=1 // pred_check
      _
    $region39: #{tpu_custom_call.1} parent=1 // pred_check_branch
      %84 = sbr.rel (0) target = $region41
    $region40: #{tpu_custom_call.1} parent=1 // pred_region
      _
    $region41: #{tpu_custom_call.1} parent=1 // pred_fallthru
      _
    // Predicated region
    $region42: #{tpu_custom_call.1} parent=1 // pred_check
      _
    $region43: #{tpu_custom_call.1} parent=1 // pred_check_branch
      %86 = sbr.rel (0) target = $region45
    $region44: #{tpu_custom_call.1} parent=1 // pred_region
      %88 = vsyncadd [#allocation9], 0
      %s89 = sshll.u32 %s10, 4
      %s90 = int_to_ptr.hbm [resolvable:$true] %s89
      %s91 = sshll.u32 [#allocation10], 4
      %s92 = int_to_ptr.vmem [resolvable:$true] %s91
      %97 = dma.hbm_to_vmem [thread:$0]  %s90, 2048, %s92, [#allocation9], 128, 128, 8
    $region45: #{tpu_custom_call.1} parent=1 // pred_fallthru
      _
    // Predicated region
    $region46: #{tpu_custom_call.1} parent=1 // pred_check
      _
    $region47: #{tpu_custom_call.1} parent=1 // pred_check_branch
      %99 = sbr.rel (0) target = $region49
    $region48: #{tpu_custom_call.1} parent=1 // pred_region
      _
    $region49: #{tpu_custom_call.1} parent=1 // pred_fallthru
      _
    // Predicated region
    $region50: #{tpu_custom_call.1} parent=1 // pred_check
      _
    $region51: #{tpu_custom_call.1} parent=1 // pred_check_branch
      %101 = sbr.rel (0) target = $region53
    $region52: #{tpu_custom_call.1} parent=1 // pred_region
      %103 = dma.done [#allocation3], 4096
    $region53: #{tpu_custom_call.1} parent=1 // pred_fallthru
      _
    // Predicated region
    $region54: #{tpu_custom_call.1} parent=1 // pred_check
      _
    $region55: #{tpu_custom_call.1} parent=1 // pred_check_branch
      %105 = sbr.rel (0) target = $region57
    $region56: #{tpu_custom_call.1} parent=1 // pred_region
      %107 = dma.done [#allocation6], 2048
    $region57: #{tpu_custom_call.1} parent=1 // pred_fallthru
      _
    // Predicated region
    $region58: #{tpu_custom_call.1} parent=1 // pred_check
      _
    $region59: #{tpu_custom_call.1} parent=1 // pred_check_branch
      %109 = sbr.rel (0) target = $region61
    $region60: #{tpu_custom_call.1} parent=1 // pred_region
      %111 = dma.done [#allocation6], 4096
    $region61: #{tpu_custom_call.1} parent=1 // pred_fallthru
      _
    // Predicated region
    $region62: #{tpu_custom_call.1} parent=1 // pred_check
      _
    $region63: #{tpu_custom_call.1} parent=1 // pred_check_branch
      %113 = sbr.rel (0) target = $region65
    $region64: #{tpu_custom_call.1} parent=1 // pred_region
      %115 = dma.done [#allocation9], 2048
    $region65: #{tpu_custom_call.1} parent=1 // pred_fallthru
      _
    // Predicated region
    $region66: #{tpu_custom_call.1} parent=1 // pred_check
      _
    $region67: #{tpu_custom_call.1} parent=1 // pred_check_branch
      %117 = sbr.rel (0) target = $region69
    $region68: #{tpu_custom_call.1} parent=1 // pred_region
      %119 = dma.done [#allocation9], 2048
    $region69: #{tpu_custom_call.1} parent=1 // pred_fallthru
      _
    %v120 = vld [vmem:[%s1] sm:$0xff]
    %v121 = vld [vmem:[%s1 + $0x8] sm:$0xff]
    %v122 = vld [vmem:[%s1 + $0x10] sm:$0xff]
    %v123 = vld [vmem:[%s1 + $0x18] sm:$0xff]
    %v124 = vld [vmem:[%s0] sm:$0xff]
    %v125 = vld [vmem:[%s0 + $0x8] sm:$0xff]
    %v126 = vld [vmem:[%s2] sm:$0xff]
    %v127 = vld [vmem:[%s2 + $0x8] sm:$0xff]
    %v128 = vld [vmem:[%s3] sm:$0x1]
    %v130 = vperm.slane %v128, 0
    %vm132 = vcmask 130048
    %v134 = vsel %vm132, %v124, 0
    %v137 = vsel %vm132, %v125, 0
    %139 = vmatpush.msra.mxu0 0.0
    %140 = vmatpush.msra.mxu0 0.0
    %141 = vmatpush.msra.mxu0 0.0
    %142 = vmatpush.msra.mxu0 0.0
    %143 = vmatpush.msra.mxu0 0.0
    %144 = vmatpush.msra.mxu0 0.0
    %145 = vmatpush.msra.mxu0 0.0
    %146 = vmatpush.msra.mxu0 0.0
    %147 = vmatpush.msra.mxu0 0.0
    %148 = vmatpush.msra.mxu0 0.0
    %149 = vmatpush.msra.mxu0 0.0
    %150 = vmatpush.msra.mxu0 0.0
    %151 = vmatpush.msra.mxu0 0.0
    %152 = vmatpush.msra.mxu0 0.0
    %153 = vmatpush.msra.mxu0 %v127
    %154 = vmatpush.msra.mxu0 %v126
    %155 = vmatmul.f32.gmra.mxu0 %v134
    %v156 = vpop.f32.mrf.mxu0
    %v157 = vadd.f32 %v130, %v156
    %158 = vmatmul.f32.gmra.mxu0 %v137
    %v159 = vpop.f32.mrf.mxu0
    %v160 = vadd.f32 %v130, %v159
    %161 = vdwg.mxu0
    %vm162 = vcmp.ge.f32.partialorder %v157, 0.0
    %vm163 = vcmp.ge.f32.partialorder %v160, 0.0
    %v164 = vmul.f32 %v157, 0.01
    %v165 = vmul.f32 %v160, 0.01
    %v166 = vsel %vm162, %v157, %v164
    %v167 = vsel %vm163, %v160, %v165
    %v168 = vld [vmem:[#allocation5] sm:$0xff]
    %v169 = vld [vmem:[#allocation5 + $0x8] sm:$0xff]
    %v170 = vld [vmem:[#allocation5 + $0x10] sm:$0xff]
    %v171 = vld [vmem:[#allocation5 + $0x18] sm:$0xff]
    %v172 = vld [vmem:[#allocation5 + $0x20] sm:$0xff]
    %v173 = vld [vmem:[#allocation5 + $0x28] sm:$0xff]
    %v174 = vld [vmem:[#allocation5 + $0x30] sm:$0xff]
    %v175 = vld [vmem:[#allocation5 + $0x38] sm:$0xff]
    %v176 = vld [vmem:[#allocation5 + $0x40] sm:$0xff]
    %v177 = vld [vmem:[#allocation5 + $0x48] sm:$0xff]
    %v178 = vld [vmem:[#allocation5 + $0x50] sm:$0xff]
    %v179 = vld [vmem:[#allocation5 + $0x58] sm:$0xff]
    %v180 = vld [vmem:[#allocation5 + $0x60] sm:$0xff]
    %v181 = vld [vmem:[#allocation5 + $0x68] sm:$0xff]
    %v182 = vld [vmem:[#allocation5 + $0x70] sm:$0xff]
    %v183 = vld [vmem:[#allocation5 + $0x78] sm:$0xff]
    %v185 = vsel %vm132, %v120, 0
    %v188 = vsel %vm132, %v121, 0
    %v191 = vsel %vm132, %v122, 0
    %v194 = vsel %vm132, %v123, 0
    %196 = vmatpush.msra.mxu0 0.0
    %197 = vmatpush.msra.mxu0 0.0
    %198 = vmatpush.msra.mxu0 0.0
    %199 = vmatpush.msra.mxu0 0.0
    %200 = vmatpush.msra.mxu0 0.0
    %201 = vmatpush.msra.mxu0 0.0
    %202 = vmatpush.msra.mxu0 0.0
    %203 = vmatpush.msra.mxu0 0.0
    %204 = vmatpush.msra.mxu0 0.0
    %205 = vmatpush.msra.mxu0 0.0
    %206 = vmatpush.msra.mxu0 0.0
    %207 = vmatpush.msra.mxu0 0.0
    %208 = vmatpush.msra.mxu0 0.0
    %209 = vmatpush.msra.mxu0 0.0
    %210 = vmatpush.msra.mxu0 %v167
    %211 = vmatpush.msra.mxu0 %v166
    %212 = vmatmul.f32.gmra.mxu0 %v185
    %v213 = vpop.f32.mrf.mxu0
    %v214 = vadd.f32 0.0, %v213
    %215 = vmatmul.f32.gmra.mxu0 %v188
    %v216 = vpop.f32.mrf.mxu0
    %v217 = vadd.f32 0.0, %v216
    %218 = vmatmul.f32.gmra.mxu0 %v191
    %v219 = vpop.f32.mrf.mxu0
    %v220 = vadd.f32 0.0, %v219
    %221 = vmatmul.f32.gmra.mxu0 %v194
    %v222 = vpop.f32.mrf.mxu0
    %v223 = vadd.f32 0.0, %v222
    %224 = vdwg.mxu0
    %v225 = vld [vmem:[#allocation2] sm:$0xff]
    %v226 = vld [vmem:[#allocation2 + $0x8] sm:$0xff]
    %v227 = vld [vmem:[#allocation2 + $0x10] sm:$0xff]
    %v228 = vld [vmem:[#allocation2 + $0x18] sm:$0xff]
    %v229 = vld [vmem:[#allocation2 + $0x20] sm:$0xff]
    %v230 = vld [vmem:[#allocation2 + $0x28] sm:$0xff]
    %v231 = vld [vmem:[#allocation2 + $0x30] sm:$0xff]
    %v232 = vld [vmem:[#allocation2 + $0x38] sm:$0xff]
    %v233 = vld [vmem:[#allocation2 + $0x40] sm:$0xff]
    %v234 = vld [vmem:[#allocation2 + $0x48] sm:$0xff]
    %v235 = vld [vmem:[#allocation2 + $0x50] sm:$0xff]
    %v236 = vld [vmem:[#allocation2 + $0x58] sm:$0xff]
    %v237 = vld [vmem:[#allocation2 + $0x60] sm:$0xff]
    %v238 = vld [vmem:[#allocation2 + $0x68] sm:$0xff]
    %v239 = vld [vmem:[#allocation2 + $0x70] sm:$0xff]
    %v240 = vld [vmem:[#allocation2 + $0x78] sm:$0xff]
    %241 = vmatpush.msra.mxu0 %v240
    %242 = vmatpush.msra.mxu0 %v239
    %243 = vmatpush.msra.mxu0 %v238
    %244 = vmatpush.msra.mxu0 %v237
    %245 = vmatpush.msra.mxu0 %v236
    %246 = vmatpush.msra.mxu0 %v235
    %247 = vmatpush.msra.mxu0 %v234
    %248 = vmatpush.msra.mxu0 %v233
    %249 = vmatpush.msra.mxu0 %v232
    %250 = vmatpush.msra.mxu0 %v231
    %251 = vmatpush.msra.mxu0 %v230
    %252 = vmatpush.msra.mxu0 %v229
    %253 = vmatpush.msra.mxu0 %v228
    %254 = vmatpush.msra.mxu0 %v227
    %255 = vmatpush.msra.mxu0 %v226
    %256 = vmatpush.msra.mxu0 %v225
    %257 = vmatmul.f32.gmra.mxu0 %v214
    %v258 = vpop.f32.mrf.mxu0
    %v259 = vadd.f32 0.0, %v258
    %260 = vmatmul.f32.gmra.mxu0 %v217
    %v261 = vpop.f32.mrf.mxu0
    %v262 = vadd.f32 0.0, %v261
    %263 = vdwg.mxu0
    %264 = vmatpush.msra.mxu0 %v183
    %265 = vmatpush.msra.mxu0 %v182
    %266 = vmatpush.msra.mxu0 %v181
    %267 = vmatpush.msra.mxu0 %v180
    %268 = vmatpush.msra.mxu0 %v179
    %269 = vmatpush.msra.mxu0 %v178
    %270 = vmatpush.msra.mxu0 %v177
    %271 = vmatpush.msra.mxu0 %v176
    %272 = vmatpush.msra.mxu0 %v175
    %273 = vmatpush.msra.mxu0 %v174
    %274 = vmatpush.msra.mxu0 %v173
    %275 = vmatpush.msra.mxu0 %v172
    %276 = vmatpush.msra.mxu0 %v171
    %277 = vmatpush.msra.mxu0 %v170
    %278 = vmatpush.msra.mxu0 %v169
    %279 = vmatpush.msra.mxu0 %v168
    %280 = vmatmul.f32.gmra.mxu0 %v166
    %v281 = vpop.f32.mrf.mxu0
    %v282 = vadd.f32 %v259, %v281
    %283 = vmatmul.f32.gmra.mxu0 %v167
    %v284 = vpop.f32.mrf.mxu0
    %v285 = vadd.f32 %v262, %v284
    %286 = vdwg.mxu0
    %s287 = scalar_lea.vmem [#allocation2], 128
    %v288 = vld [vmem:[%s287] sm:$0xff]
    %v289 = vld [vmem:[%s287 + $0x8] sm:$0xff]
    %v290 = vld [vmem:[%s287 + $0x10] sm:$0xff]
    %v291 = vld [vmem:[%s287 + $0x18] sm:$0xff]
    %v292 = vld [vmem:[%s287 + $0x20] sm:$0xff]
    %v293 = vld [vmem:[%s287 + $0x28] sm:$0xff]
    %v294 = vld [vmem:[%s287 + $0x30] sm:$0xff]
    %v295 = vld [vmem:[%s287 + $0x38] sm:$0xff]
    %v296 = vld [vmem:[%s287 + $0x40] sm:$0xff]
    %v297 = vld [vmem:[%s287 + $0x48] sm:$0xff]
    %v298 = vld [vmem:[%s287 + $0x50] sm:$0xff]
    %v299 = vld [vmem:[%s287 + $0x58] sm:$0xff]
    %v300 = vld [vmem:[%s287 + $0x60] sm:$0xff]
    %v301 = vld [vmem:[%s287 + $0x68] sm:$0xff]
    %v302 = vld [vmem:[%s287 + $0x70] sm:$0xff]
    %v303 = vld [vmem:[%s287 + $0x78] sm:$0xff]
    %304 = vmatpush.msra.mxu0 %v303
    %305 = vmatpush.msra.mxu0 %v302
    %306 = vmatpush.msra.mxu0 %v301
    %307 = vmatpush.msra.mxu0 %v300
    %308 = vmatpush.msra.mxu0 %v299
    %309 = vmatpush.msra.mxu0 %v298
    %310 = vmatpush.msra.mxu0 %v297
    %311 = vmatpush.msra.mxu0 %v296
    %312 = vmatpush.msra.mxu0 %v295
    %313 = vmatpush.msra.mxu0 %v294
    %314 = vmatpush.msra.mxu0 %v293
    %315 = vmatpush.msra.mxu0 %v292
    %316 = vmatpush.msra.mxu0 %v291
    %317 = vmatpush.msra.mxu0 %v290
    %318 = vmatpush.msra.mxu0 %v289
    %319 = vmatpush.msra.mxu0 %v288
    %320 = vmatmul.f32.gmra.mxu0 %v220
    %v321 = vpop.f32.mrf.mxu0
    %v322 = vadd.f32 0.0, %v321
    %323 = vmatmul.f32.gmra.mxu0 %v223
    %v324 = vpop.f32.mrf.mxu0
    %v325 = vadd.f32 0.0, %v324
    %326 = vdwg.mxu0
    %v327 = vadd.f32 %v282, %v322
    %v328 = vadd.f32 %v285, %v325
    %v329 = vld [vmem:[%s6] sm:$0x1]
    %v331 = vperm.slane %v329, 0
    %v333 = vadd.f32 %v327, %v331
    %v334 = vadd.f32 %v328, %v331
    %v335 = vld [vmem:[#allocation8] sm:$0xff]
    %v336 = vld [vmem:[#allocation8 + $0x8] sm:$0xff]
    %v337 = vld [vmem:[#allocation8 + $0x10] sm:$0xff]
    %v338 = vld [vmem:[#allocation8 + $0x18] sm:$0xff]
    %v339 = vld [vmem:[#allocation8 + $0x20] sm:$0xff]
    %v340 = vld [vmem:[#allocation8 + $0x28] sm:$0xff]
    %v341 = vld [vmem:[#allocation8 + $0x30] sm:$0xff]
    %v342 = vld [vmem:[#allocation8 + $0x38] sm:$0xff]
    %v343 = vld [vmem:[#allocation8 + $0x40] sm:$0xff]
    %v344 = vld [vmem:[#allocation8 + $0x48] sm:$0xff]
    %v345 = vld [vmem:[#allocation8 + $0x50] sm:$0xff]
    %v346 = vld [vmem:[#allocation8 + $0x58] sm:$0xff]
    %v347 = vld [vmem:[#allocation8 + $0x60] sm:$0xff]
    %v348 = vld [vmem:[#allocation8 + $0x68] sm:$0xff]
    %v349 = vld [vmem:[#allocation8 + $0x70] sm:$0xff]
    %v350 = vld [vmem:[#allocation8 + $0x78] sm:$0xff]
    %351 = vmatpush.msra.mxu0 0.0
    %352 = vmatpush.msra.mxu0 0.0
    %353 = vmatpush.msra.mxu0 0.0
    %354 = vmatpush.msra.mxu0 0.0
    %355 = vmatpush.msra.mxu0 0.0
    %356 = vmatpush.msra.mxu0 0.0
    %357 = vmatpush.msra.mxu0 0.0
    %358 = vmatpush.msra.mxu0 0.0
    %359 = vmatpush.msra.mxu0 0.0
    %360 = vmatpush.msra.mxu0 0.0
    %361 = vmatpush.msra.mxu0 0.0
    %362 = vmatpush.msra.mxu0 0.0
    %363 = vmatpush.msra.mxu0 0.0
    %364 = vmatpush.msra.mxu0 0.0
    %365 = vmatpush.msra.mxu0 %v334
    %366 = vmatpush.msra.mxu0 %v333
    %367 = vmatmul.f32.gmra.mxu0 %v185
    %v368 = vpop.f32.mrf.mxu0
    %v369 = vadd.f32 0.0, %v368
    %370 = vmatmul.f32.gmra.mxu0 %v188
    %v371 = vpop.f32.mrf.mxu0
    %v372 = vadd.f32 0.0, %v371
    %373 = vmatmul.f32.gmra.mxu0 %v191
    %v374 = vpop.f32.mrf.mxu0
    %v375 = vadd.f32 0.0, %v374
    %376 = vmatmul.f32.gmra.mxu0 %v194
    %v377 = vpop.f32.mrf.mxu0
    %v378 = vadd.f32 0.0, %v377
    %379 = vdwg.mxu0
    %v380 = vld [vmem:[#allocation7] sm:$0xff]
    %v381 = vld [vmem:[#allocation7 + $0x8] sm:$0xff]
    %v382 = vld [vmem:[#allocation7 + $0x10] sm:$0xff]
    %v383 = vld [vmem:[#allocation7 + $0x18] sm:$0xff]
    %v384 = vld [vmem:[#allocation7 + $0x20] sm:$0xff]
    %v385 = vld [vmem:[#allocation7 + $0x28] sm:$0xff]
    %v386 = vld [vmem:[#allocation7 + $0x30] sm:$0xff]
    %v387 = vld [vmem:[#allocation7 + $0x38] sm:$0xff]
    %v388 = vld [vmem:[#allocation7 + $0x40] sm:$0xff]
    %v389 = vld [vmem:[#allocation7 + $0x48] sm:$0xff]
    %v390 = vld [vmem:[#allocation7 + $0x50] sm:$0xff]
    %v391 = vld [vmem:[#allocation7 + $0x58] sm:$0xff]
    %v392 = vld [vmem:[#allocation7 + $0x60] sm:$0xff]
    %v393 = vld [vmem:[#allocation7 + $0x68] sm:$0xff]
    %v394 = vld [vmem:[#allocation7 + $0x70] sm:$0xff]
    %v395 = vld [vmem:[#allocation7 + $0x78] sm:$0xff]
    %396 = vmatpush.msra.mxu0 %v395
    %397 = vmatpush.msra.mxu0 %v394
    %398 = vmatpush.msra.mxu0 %v393
    %399 = vmatpush.msra.mxu0 %v392
    %400 = vmatpush.msra.mxu0 %v391
    %401 = vmatpush.msra.mxu0 %v390
    %402 = vmatpush.msra.mxu0 %v389
    %403 = vmatpush.msra.mxu0 %v388
    %404 = vmatpush.msra.mxu0 %v387
    %405 = vmatpush.msra.mxu0 %v386
    %406 = vmatpush.msra.mxu0 %v385
    %407 = vmatpush.msra.mxu0 %v384
    %408 = vmatpush.msra.mxu0 %v383
    %409 = vmatpush.msra.mxu0 %v382
    %410 = vmatpush.msra.mxu0 %v381
    %411 = vmatpush.msra.mxu0 %v380
    %412 = vmatmul.f32.gmra.mxu0 %v369
    %v413 = vpop.f32.mrf.mxu0
    %v414 = vadd.f32 0.0, %v413
    %415 = vmatmul.f32.gmra.mxu0 %v372
    %v416 = vpop.f32.mrf.mxu0
    %v417 = vadd.f32 0.0, %v416
    %418 = vdwg.mxu0
    %419 = vmatpush.msra.mxu0 %v350
    %420 = vmatpush.msra.mxu0 %v349
    %421 = vmatpush.msra.mxu0 %v348
    %422 = vmatpush.msra.mxu0 %v347
    %423 = vmatpush.msra.mxu0 %v346
    %424 = vmatpush.msra.mxu0 %v345
    %425 = vmatpush.msra.mxu0 %v344
    %426 = vmatpush.msra.mxu0 %v343
    %427 = vmatpush.msra.mxu0 %v342
    %428 = vmatpush.msra.mxu0 %v341
    %429 = vmatpush.msra.mxu0 %v340
    %430 = vmatpush.msra.mxu0 %v339
    %431 = vmatpush.msra.mxu0 %v338
    %432 = vmatpush.msra.mxu0 %v337
    %433 = vmatpush.msra.mxu0 %v336
    %434 = vmatpush.msra.mxu0 %v335
    %435 = vmatmul.f32.gmra.mxu0 %v333
    %v436 = vpop.f32.mrf.mxu0
    %v437 = vadd.f32 %v414, %v436
    %438 = vmatmul.f32.gmra.mxu0 %v334
    %v439 = vpop.f32.mrf.mxu0
    %v440 = vadd.f32 %v417, %v439
    %441 = vdwg.mxu0
    %s442 = scalar_lea.vmem [#allocation7], 128
    %v443 = vld [vmem:[%s442] sm:$0xff]
    %v444 = vld [vmem:[%s442 + $0x8] sm:$0xff]
    %v445 = vld [vmem:[%s442 + $0x10] sm:$0xff]
    %v446 = vld [vmem:[%s442 + $0x18] sm:$0xff]
    %v447 = vld [vmem:[%s442 + $0x20] sm:$0xff]
    %v448 = vld [vmem:[%s442 + $0x28] sm:$0xff]
    %v449 = vld [vmem:[%s442 + $0x30] sm:$0xff]
    %v450 = vld [vmem:[%s442 + $0x38] sm:$0xff]
    %v451 = vld [vmem:[%s442 + $0x40] sm:$0xff]
    %v452 = vld [vmem:[%s442 + $0x48] sm:$0xff]
    %v453 = vld [vmem:[%s442 + $0x50] sm:$0xff]
    %v454 = vld [vmem:[%s442 + $0x58] sm:$0xff]
    %v455 = vld [vmem:[%s442 + $0x60] sm:$0xff]
    %v456 = vld [vmem:[%s442 + $0x68] sm:$0xff]
    %v457 = vld [vmem:[%s442 + $0x70] sm:$0xff]
    %v458 = vld [vmem:[%s442 + $0x78] sm:$0xff]
    %459 = vmatpush.msra.mxu0 %v458
    %460 = vmatpush.msra.mxu0 %v457
    %461 = vmatpush.msra.mxu0 %v456
    %462 = vmatpush.msra.mxu0 %v455
    %463 = vmatpush.msra.mxu0 %v454
    %464 = vmatpush.msra.mxu0 %v453
    %465 = vmatpush.msra.mxu0 %v452
    %466 = vmatpush.msra.mxu0 %v451
    %467 = vmatpush.msra.mxu0 %v450
    %468 = vmatpush.msra.mxu0 %v449
    %469 = vmatpush.msra.mxu0 %v448
    %470 = vmatpush.msra.mxu0 %v447
    %471 = vmatpush.msra.mxu0 %v446
    %472 = vmatpush.msra.mxu0 %v445
    %473 = vmatpush.msra.mxu0 %v444
    %474 = vmatpush.msra.mxu0 %v443
    %475 = vmatmul.f32.gmra.mxu0 %v375
    %v476 = vpop.f32.mrf.mxu0
    %v477 = vadd.f32 0.0, %v476
    %478 = vmatmul.f32.gmra.mxu0 %v378
    %v479 = vpop.f32.mrf.mxu0
    %v480 = vadd.f32 0.0, %v479
    %481 = vdwg.mxu0
    %v482 = vadd.f32 %v437, %v477
    %v483 = vadd.f32 %v440, %v480
    %v484 = vld [vmem:[%s9] sm:$0x1]
    %v486 = vperm.slane %v484, 0
    %v488 = vadd.f32 %v482, %v486
    %v489 = vadd.f32 %v483, %v486
    %v490 = vld [vmem:[#allocation10] sm:$0xff]
    %v491 = vld [vmem:[#allocation10 + $0x8] sm:$0xff]
    %v492 = vld [vmem:[#allocation10 + $0x10] sm:$0xff]
    %v493 = vld [vmem:[#allocation10 + $0x18] sm:$0xff]
    %v494 = vld [vmem:[#allocation10 + $0x20] sm:$0xff]
    %v495 = vld [vmem:[#allocation10 + $0x28] sm:$0xff]
    %v496 = vld [vmem:[#allocation10 + $0x30] sm:$0xff]
    %v497 = vld [vmem:[#allocation10 + $0x38] sm:$0xff]
    %v498 = vld [vmem:[#allocation10 + $0x40] sm:$0xff]
    %v499 = vld [vmem:[#allocation10 + $0x48] sm:$0xff]
    %v500 = vld [vmem:[#allocation10 + $0x50] sm:$0xff]
    %v501 = vld [vmem:[#allocation10 + $0x58] sm:$0xff]
    %v502 = vld [vmem:[#allocation10 + $0x60] sm:$0xff]
    %v503 = vld [vmem:[#allocation10 + $0x68] sm:$0xff]
    %v504 = vld [vmem:[#allocation10 + $0x70] sm:$0xff]
    %v505 = vld [vmem:[#allocation10 + $0x78] sm:$0xff]
    %v506 = vld [vmem:[%s11] sm:$0x1]
    %v508 = vperm.slane %v506, 0
    %510 = vmatpush.msra.mxu0 %v505
    %511 = vmatpush.msra.mxu0 %v504
    %512 = vmatpush.msra.mxu0 %v503
    %513 = vmatpush.msra.mxu0 %v502
    %514 = vmatpush.msra.mxu0 %v501
    %515 = vmatpush.msra.mxu0 %v500
    %516 = vmatpush.msra.mxu0 %v499
    %517 = vmatpush.msra.mxu0 %v498
    %518 = vmatpush.msra.mxu0 %v497
    %519 = vmatpush.msra.mxu0 %v496
    %520 = vmatpush.msra.mxu0 %v495
    %521 = vmatpush.msra.mxu0 %v494
    %522 = vmatpush.msra.mxu0 %v493
    %523 = vmatpush.msra.mxu0 %v492
    %524 = vmatpush.msra.mxu0 %v491
    %525 = vmatpush.msra.mxu0 %v490
    %526 = vmatmul.f32.gmra.mxu0 %v488
    %v527 = vpop.f32.mrf.mxu0
    %v528 = vadd.f32 %v508, %v527
    %529 = vmatmul.f32.gmra.mxu0 %v489
    %v530 = vpop.f32.mrf.mxu0
    %v531 = vadd.f32 %v508, %v530
    %532 = vdwg.mxu0
    %v533 = vmul.f32 %v528, %v531
    %534 = vst [vmem:[#allocation11] sm:$0xff] %v533
    // Predicated region
    $region70: #{tpu_custom_call.1} parent=1 // pred_check
      _
    $region71: #{tpu_custom_call.1} parent=1 // pred_check_branch
      %536 = sbr.rel (0) target = $region73
    $region72: #{tpu_custom_call.1} parent=1 // pred_region
      %538 = vsyncadd [#allocation4], 0
      %s540 = sshll.u32 [#allocation11], 4
      %s541 = int_to_ptr.vmem [resolvable:$true] %s540
      %s542 = sshll.u32 %s12, 4
      %s543 = int_to_ptr.hbm [resolvable:$true] %s542
      %545 = dma.vmem_to_hbm [thread:$0]  %s541, 128, %s543, [#allocation4]
    $region73: #{tpu_custom_call.1} parent=1 // pred_fallthru
      _
    // Predicated region
    $region74: #{tpu_custom_call.1} parent=1 // pred_check
      _
    $region75: #{tpu_custom_call.1} parent=1 // pred_check_branch
      %547 = sbr.rel (0) target = $region77
    $region76: #{tpu_custom_call.1} parent=1 // pred_region
      %549 = dma.done [#allocation4], 128
    $region77: #{tpu_custom_call.1} parent=1 // pred_fallthru
      _
    %550 = vsyncpa [#allocation3], 1
    %551 = vsyncpa [#allocation6], 1
    %552 = vsyncpa [#allocation9], 1
    %553 = vsyncpa [#allocation4], 1

</llo_original>
